<compile_context>
chip_gen: v7x
topology: tpu7x:2x2x1
jax: 0.10.0
libtpu: 0.0.40
codegen_flags: <defaults>
</compile_context>

<pallas_src>
import jax
import jax.numpy as jnp
from jax.experimental import pallas as pl
from jax.experimental.pallas import tpu as pltpu


def _make_adain_kernel(eps: float, inv_hw: float):
    def kernel(x_ref, w_ref, b_ref, o_ref):
        # x_ref: [R, HW]   rows = (n, c) pairs, H*W on the lane axis
        # w_ref, b_ref: [R, 1]   per-row gamma / beta
        x = x_ref[...].astype(jnp.float32)
        mu = jnp.sum(x, axis=-1, keepdims=True) * inv_hw            # [R, 1]
        d = x - mu
        var = jnp.sum(d * d, axis=-1, keepdims=True) * inv_hw       # biased variance
        xhat = d * jax.lax.rsqrt(var + eps)
        o_ref[...] = (w_ref[...] * xhat + b_ref[...]).astype(o_ref.dtype)
    return kernel


def _choose_row_block(nc: int, hw: int, itemsize: int) -> int:
    # Keep one input block around ~4 MiB so the double-buffered pipeline fits the
    # scoped-VMEM default on every generation (v7x is the tightest).
    budget = 4 * 1024 * 1024
    max_rows = max(8, budget // max(1, hw * itemsize))
    if nc <= max_rows:
        return nc                  # full rows-dim block: always layout-legal
    return (max_rows // 8) * 8     # tiled: sublane dim must be a multiple of 8


def adain2d(x_nchw, weight, bias, *, eps: float = 1e-5):
    """AdaIN2d.forward: per-(sample, channel) instance norm + per-channel affine."""
    N, C, H, W = x_nchw.shape
    NC, HW = N * C, H * W

    x2 = x_nchw.reshape(NC, HW)                                    # free view of NCHW
    w2 = jnp.broadcast_to(weight.reshape(1, C).astype(jnp.float32), (N, C)).reshape(NC, 1)
    b2 = jnp.broadcast_to(bias.reshape(1, C).astype(jnp.float32), (N, C)).reshape(NC, 1)

    rows = _choose_row_block(NC, HW, x2.dtype.itemsize)
    grid = (pl.cdiv(NC, rows),)

    out2 = pl.pallas_call(
        _make_adain_kernel(eps, 1.0 / HW),
        out_shape=jax.ShapeDtypeStruct((NC, HW), x_nchw.dtype),
        grid=grid,
        in_specs=[pl.BlockSpec((rows, HW), lambda i: (i, 0)),
                  pl.BlockSpec((rows, 1), lambda i: (i, 0)),
                  pl.BlockSpec((rows, 1), lambda i: (i, 0))],
        out_specs=pl.BlockSpec((rows, HW), lambda i: (i, 0)),
        compiler_params=pltpu.CompilerParams(
            dimension_semantics=("parallel",)),
    )(x2, w2, b2)
    return out2.reshape(N, C, H, W)


# ----------------------------- Pure-JAX reference ------------------------------

def reference(x, weight, bias, eps=1e-5):
    mu = jnp.mean(x, axis=(2, 3), keepdims=True)
    var = jnp.mean((x - mu) ** 2, axis=(2, 3), keepdims=True)
    xhat = (x - mu) * jax.lax.rsqrt(var + eps)
    return weight.reshape(1, -1, 1, 1) * xhat + bias.reshape(1, -1, 1, 1)


# ----------------------------------- main ---------------------------------------

if __name__ == "__main__":
    N, C, H, W = 2, 4, 16, 16
    eps = 1e-5

    key = jax.random.PRNGKey(0)
    kx, kw, kb = jax.random.split(key, 3)
    x = jax.random.normal(kx, (N, C, H, W), jnp.float32)           # PyTorch NCHW input
    weight = jax.random.normal(kw, (C,), jnp.float32)              # AdaIN gamma (forward asserts non-None)
    bias = jax.random.normal(kb, (C,), jnp.float32)                # AdaIN beta

    out = adain2d(x, weight, bias, eps=eps)
    out = jax.block_until_ready(out)

    ref = reference(x, weight, bias, eps)
    assert out.shape == (N, C, H, W), out.shape
    err = float(jnp.max(jnp.abs(out - ref)))
    assert err < 1e-4, f"max abs error too large: {err}"

    print("KERNEL_OK")
</pallas_src>

<mosaic_0001>
module attributes {stable_mosaic.version = 11 : i64} {
  func.func @kernel(%arg0: i32, %arg1: memref<8x256xf32, #tpu.memory_space<vmem>>, %arg2: memref<8x1xf32, #tpu.memory_space<vmem>>, %arg3: memref<8x1xf32, #tpu.memory_space<vmem>>, %arg4: memref<8x256xf32, #tpu.memory_space<vmem>>) attributes {dimension_semantics = [#tpu.dimension_semantics<parallel>], iteration_bounds = array<i64: 1>, scalar_prefetch = 0 : i64, scratch_operands = 0 : i64, tpu.core_type = #tpu.core_type<tc>, window_params = [{transform_indices = @transform_0, window_bounds = array<i64: 8, 256>}, {transform_indices = @transform_1, window_bounds = array<i64: 8, 1>}, {transform_indices = @transform_2, window_bounds = array<i64: 8, 1>}, {transform_indices = @transform_3, window_bounds = array<i64: 8, 256>}]} {
    %c0 = arith.constant 0 : index
    %c0_0 = arith.constant 0 : index
    %0 = vector.load %arg1[%c0, %c0_0] : memref<8x256xf32, #tpu.memory_space<vmem>>, vector<8x256xf32>
    %cst = arith.constant dense<0.000000e+00> : vector<8xf32>
    %1 = vector.multi_reduction <add>, %0, %cst [1] : vector<8x256xf32> to vector<8xf32>
    %2 = vector.shape_cast %1 : vector<8xf32> to vector<8x1xf32>
    %cst_1 = arith.constant 3.906250e-03 : f32
    %3 = vector.broadcast %cst_1 : f32 to vector<8x1xf32>
    %4 = arith.mulf %2, %3 : vector<8x1xf32>
    %5 = vector.broadcast %4 : vector<8x1xf32> to vector<8x256xf32>
    %6 = arith.subf %0, %5 : vector<8x256xf32>
    %7 = arith.mulf %6, %6 : vector<8x256xf32>
    %cst_2 = arith.constant dense<0.000000e+00> : vector<8xf32>
    %8 = vector.multi_reduction <add>, %7, %cst_2 [1] : vector<8x256xf32> to vector<8xf32>
    %9 = vector.shape_cast %8 : vector<8xf32> to vector<8x1xf32>
    %cst_3 = arith.constant 3.906250e-03 : f32
    %10 = vector.broadcast %cst_3 : f32 to vector<8x1xf32>
    %11 = arith.mulf %9, %10 : vector<8x1xf32>
    %cst_4 = arith.constant 9.99999974E-6 : f32
    %12 = vector.broadcast %cst_4 : f32 to vector<8x1xf32>
    %13 = arith.addf %11, %12 : vector<8x1xf32>
    %14 = math.rsqrt %13 : vector<8x1xf32>
    %15 = vector.broadcast %14 : vector<8x1xf32> to vector<8x256xf32>
    %16 = arith.mulf %6, %15 : vector<8x256xf32>
    %c0_5 = arith.constant 0 : index
    %c0_6 = arith.constant 0 : index
    %17 = vector.load %arg2[%c0_5, %c0_6] : memref<8x1xf32, #tpu.memory_space<vmem>>, vector<8x1xf32>
    %18 = vector.broadcast %17 : vector<8x1xf32> to vector<8x256xf32>
    %19 = arith.mulf %18, %16 : vector<8x256xf32>
    %c0_7 = arith.constant 0 : index
    %c0_8 = arith.constant 0 : index
    %20 = vector.load %arg3[%c0_7, %c0_8] : memref<8x1xf32, #tpu.memory_space<vmem>>, vector<8x1xf32>
    %21 = vector.broadcast %20 : vector<8x1xf32> to vector<8x256xf32>
    %22 = arith.addf %19, %21 : vector<8x256xf32>
    %c0_9 = arith.constant 0 : index
    %c0_10 = arith.constant 0 : index
    %23 = vector.load %arg4[%c0_9, %c0_10] : memref<8x256xf32, #tpu.memory_space<vmem>>, vector<8x256xf32>
    tpu.vector_store %arg4[%c0_9, %c0_10], %22 {strides = array<i32>} : memref<8x256xf32, #tpu.memory_space<vmem>>, vector<8x256xf32>,
    return
  }
  func.func @transform_0(%arg0: i32) -> (i32, i32) {
    %c0_i32 = arith.constant 0 : i32
    %c0_i32_0 = arith.constant 0 : i32
    return %arg0, %c0_i32 : i32, i32
  }
  func.func @transform_1(%arg0: i32) -> (i32, i32) {
    %c0_i32 = arith.constant 0 : i32
    %c0_i32_0 = arith.constant 0 : i32
    return %arg0, %c0_i32 : i32, i32
  }
  func.func @transform_2(%arg0: i32) -> (i32, i32) {
    %c0_i32 = arith.constant 0 : i32
    %c0_i32_0 = arith.constant 0 : i32
    return %arg0, %c0_i32 : i32, i32
  }
  func.func @transform_3(%arg0: i32) -> (i32, i32) {
    %c0_i32 = arith.constant 0 : i32
    %c0_i32_0 = arith.constant 0 : i32
    return %arg0, %c0_i32 : i32, i32
  }
}

</mosaic_0001>

<llo_original>
// kernel: tpu_custom_call.1
$region0: #{tpu_custom_call.1}
  #allocation0 [shape = 'u32[]', space=smem, size = 0x4, offset = 0x4, fixed_abs, tag = 'smem constant byte address 0x4 - core index']
  #allocation1 [shape = 'u32[144,128]{1,0:T(1,128)}', space=vmem, size = 0x12000, scoped, tag = 'internal scratch']
  %s0 = inlined_call_operand.vmem [shape: f32[8,256], index: 0, kind: input, shape index: {}]
  %s1 = inlined_call_operand.vmem [shape: f32[8,1], index: 1, kind: input, shape index: {}]
  %s2 = inlined_call_operand.vmem [shape: f32[8,1], index: 2, kind: input, shape index: {}]
  %s3 = inlined_call_operand.hbm [shape: f32[8,256], index: 3, kind: output, shape index: {}]
  %s4 = sld [smem:[#allocation0]]
  $region22: #{tpu_custom_call.1} parent=0
    _
  %s6 = ssub.s32 1, %s4
  %s7 = scalar_select 0, %s6, %s4
  $region1: #{tpu_custom_call.1} parent=0
    #allocation2 [shape = 'u8[8192]{0}', space=vmem, size = 0x2000, scoped, tag = 'output window, operand 0, single buffered']
    #allocation3 [shape = 's32[1]{0}', space=sflag, size = 0x4, scoped, tag = 'scoped memory for tpu_custom_call.1']
    %8 = vsyncpa [#allocation3], 0
    // Predicated region
    $region2: #{tpu_custom_call.1} parent=1 // pred_check
      _
    $region3: #{tpu_custom_call.1} parent=1 // pred_check_branch
      %10 = sbr.rel (0) target = $region5
    $region4: #{tpu_custom_call.1} parent=1 // pred_region
      _
    $region5: #{tpu_custom_call.1} parent=1 // pred_fallthru
      _
    // Predicated region
    $region6: #{tpu_custom_call.1} parent=1 // pred_check
      _
    $region7: #{tpu_custom_call.1} parent=1 // pred_check_branch
      %12 = sbr.rel (0) target = $region9
    $region8: #{tpu_custom_call.1} parent=1 // pred_region
      _
    $region9: #{tpu_custom_call.1} parent=1 // pred_fallthru
      _
    // Predicated region
    $region10: #{tpu_custom_call.1} parent=1 // pred_check
      _
    $region11: #{tpu_custom_call.1} parent=1 // pred_check_branch
      %14 = sbr.rel (0) target = $region13
    $region12: #{tpu_custom_call.1} parent=1 // pred_region
      _
    $region13: #{tpu_custom_call.1} parent=1 // pred_fallthru
      _
    %v15 = vld [vmem:[%s0] sm:$0xff]
    %v16 = vld [vmem:[%s0 + $0x8] sm:$0xff]
    %v17 = vadd.f32 %v15, %v16
    %18 = vadd.xlane.f32.xlu0 %v17
    %v19 = vpop.xlane.xlu0 %18
    %v20 = vmul.f32 %v19, 0.00390625
    %v21 = vsub.f32 %v15, %v20
    %v22 = vsub.f32 %v16, %v20
    %v23 = vmul.f32 %v21, %v21
    %v24 = vmul.f32 %v22, %v22
    %v25 = vadd.f32 %v23, %v24
    %26 = vadd.xlane.f32.xlu0 %v25
    %v27 = vpop.xlane.xlu0 %26
    %v28 = vmul.f32 %v27, 0.00390625
    %v29 = vadd.f32 %v28, 1e-05
    %v30 = vrsqrt.pop %v29
    %v31 = vmul.f32 %v21, %v30
    %v32 = vmul.f32 %v22, %v30
    %v33 = vld [vmem:[%s1] sm:$0xff]
    %35 = vset.pattern.permute.xlu0 0
    %36 = vperm.xlu0 %35, %v33
    %v37 = vpop.permute.xlu0 %36
    %v39 = vmul.f32 %v37, %v31
    %v40 = vmul.f32 %v37, %v32
    %v41 = vld [vmem:[%s2] sm:$0xff]
    %43 = vset.pattern.permute.xlu0 0
    %44 = vperm.xlu0 %43, %v41
    %v45 = vpop.permute.xlu0 %44
    %v47 = vadd.f32 %v39, %v45
    %v48 = vadd.f32 %v40, %v45
    %49 = vst [vmem:[#allocation2] sm:$0xff] %v47
    %50 = vst [vmem:[#allocation2 + $0x8] sm:$0xff] %v48
    // Predicated region
    $region14: #{tpu_custom_call.1} parent=1 // pred_check
      _
    $region15: #{tpu_custom_call.1} parent=1 // pred_check_branch
      %52 = sbr.rel (0) target = $region17
    $region16: #{tpu_custom_call.1} parent=1 // pred_region
      %s54 = ssub.s32 256, 256
      %55 = vsyncadd [#allocation3], %s54
      %s57 = sshll.u32 [#allocation2], 4
      %s58 = int_to_ptr.vmem [resolvable:$true] %s57
      %60 = dma.vmem_to_hbm [thread:$0]  %s58, 256, %s3, [#allocation3]
    $region17: #{tpu_custom_call.1} parent=1 // pred_fallthru
      _
    // Predicated region
    $region18: #{tpu_custom_call.1} parent=1 // pred_check
      _
    $region19: #{tpu_custom_call.1} parent=1 // pred_check_branch
      %62 = sbr.rel (0) target = $region21
    $region20: #{tpu_custom_call.1} parent=1 // pred_region
      %63 = dma.done [#allocation3], 256
    $region21: #{tpu_custom_call.1} parent=1 // pred_fallthru
      _
    %64 = vsyncpa [#allocation3], 1

</llo_original>
